<compile_context>
chip_gen: v7x
topology: tpu7x:2x2x1
jax: 0.10.0
libtpu: 0.0.40
codegen_flags: <defaults>
</compile_context>

<pallas_src>
import functools

import jax
import jax.numpy as jnp
from jax import lax
from jax.experimental import pallas as pl
from jax.experimental.pallas import tpu as pltpu


def _round_up(a, b):
    return -(-a // b) * b


def _vmem_capacity_bytes():
    try:
        return int(pltpu.get_tpu_info().vmem_capacity_bytes)
    except Exception:
        return 64 << 20  # conservative (v7x per-core VMEM)


# --------------------------------------------------------------------------
# Kernel A: weights fully VMEM-resident, grid = (row tiles,)
# --------------------------------------------------------------------------
def _highway_resident_kernel(x_ref, *refs, num_layers, hidden, fused, unroll,
                             compute_dtype):
    o_ref = refs[-1]
    x = x_ref[...].astype(jnp.float32)

    if fused:
        w_ref, b_ref = refs[0], refs[1]          # (L, H, 2H), (L, 1, 2H)

        def layer(l, x):
            xc = x.astype(compute_dtype)
            z = jnp.dot(xc, w_ref[l], preferred_element_type=jnp.float32)
            z = z + b_ref[l]
            t = jnp.maximum(z[:, :hidden], 0.0)   # lane-aligned split (H%128==0)
            g = jax.nn.sigmoid(z[:, hidden:])
            return x + g * (t - x)                # == g*t + (1-g)*x
    else:
        wt_ref, bt_ref, wg_ref, bg_ref = refs[0], refs[1], refs[2], refs[3]

        def layer(l, x):
            xc = x.astype(compute_dtype)
            t = jnp.dot(xc, wt_ref[l], preferred_element_type=jnp.float32) + bt_ref[l]
            g = jnp.dot(xc, wg_ref[l], preferred_element_type=jnp.float32) + bg_ref[l]
            t = jnp.maximum(t, 0.0)
            g = jax.nn.sigmoid(g)
            return x + g * (t - x)

    x = lax.fori_loop(0, num_layers, layer, x, unroll=unroll)
    o_ref[...] = x.astype(o_ref.dtype)


# --------------------------------------------------------------------------
# Kernel B: layer streaming, grid = (row tiles, L); one layer's weights per step,
# running x kept in a VMEM scratch accumulator.
# --------------------------------------------------------------------------
def _highway_stream_kernel(x_ref, *refs, hidden, fused, compute_dtype):
    o_ref, acc_ref = refs[-2], refs[-1]
    l = pl.program_id(1)

    @pl.when(l == 0)
    def _():
        acc_ref[...] = x_ref[...].astype(jnp.float32)

    x = acc_ref[...]
    xc = x.astype(compute_dtype)

    if fused:
        w_ref, b_ref = refs[0], refs[1]          # (1, H, 2H), (1, 1, 2H)
        z = jnp.dot(xc, w_ref[0], preferred_element_type=jnp.float32) + b_ref[0]
        t = jnp.maximum(z[:, :hidden], 0.0)
        g = jax.nn.sigmoid(z[:, hidden:])
    else:
        wt_ref, bt_ref, wg_ref, bg_ref = refs[0], refs[1], refs[2], refs[3]
        t = jnp.dot(xc, wt_ref[0], preferred_element_type=jnp.float32) + bt_ref[0]
        g = jnp.dot(xc, wg_ref[0], preferred_element_type=jnp.float32) + bg_ref[0]
        t = jnp.maximum(t, 0.0)
        g = jax.nn.sigmoid(g)

    x = x + g * (t - x)
    acc_ref[...] = x

    @pl.when(l == pl.num_programs(1) - 1)
    def _():
        o_ref[...] = x.astype(o_ref.dtype)


# --------------------------------------------------------------------------
# Wrapper
# --------------------------------------------------------------------------
def highway_encoder(x, wt, bt, wg, bg, *, row_tile=512, matmul_dtype=None,
                    force_stream=None):
    """x: (..., H). Weights wt/wg: (L, H_in, H_out); biases bt/bg: (L, 1, H)."""
    orig_shape = x.shape
    H = orig_shape[-1]
    L = wt.shape[0]

    x2 = x.reshape(-1, H)
    M = x2.shape[0]

    # MXU dtype: bf16 when MXU-bound (H >= 128); f32 for small H (accuracy).
    if matmul_dtype is None:
        matmul_dtype = jnp.bfloat16 if H >= 128 else jnp.float32
    compute_dtype = jnp.dtype(matmul_dtype)

    # Fuse transform+gate into one (H, 2H) matmul only when the t/g split is
    # 128-lane aligned; otherwise use two separate (H, H) matmuls.
    fused = (H % 128 == 0)
    if fused:
        w_args = (jnp.concatenate([wt, wg], axis=-1).astype(compute_dtype),
                  jnp.concatenate([bt, bg], axis=-1).astype(jnp.float32))
    else:
        w_args = (wt.astype(compute_dtype), bt.astype(jnp.float32),
                  wg.astype(compute_dtype), bg.astype(jnp.float32))

    w_itemsize = compute_dtype.itemsize
    x_itemsize = jnp.dtype(x.dtype).itemsize
    w_layer_bytes = 2 * H * H * w_itemsize + 2 * H * 4   # one layer (weights + f32 biases)

    vmem_cap = _vmem_capacity_bytes()
    budget = (vmem_cap * 3) // 4        # ~48 MiB on v7x, ~96 MiB on v5e/v6e
    hard_cap = vmem_cap - (8 << 20)

    # Layer streaming when the double-buffered resident weight stack is too big.
    if force_stream is None:
        stream = 2 * L * w_layer_bytes > budget // 3
    else:
        stream = bool(force_stream)
    resident_w_bytes = 2 * (w_layer_bytes if stream else L * w_layer_bytes)

    def vmem_need(tm):
        io = 2 * 2 * tm * H * x_itemsize   # in + out tiles, double-buffered
        tmp = 8 * tm * H * 4               # f32 temporaries (x, z, t, g, acc, slack)
        return resident_w_bytes + io + tmp + (2 << 20)

    # Row tile: biggest that fits the VMEM budget, sublane-aligned.
    tile_m = _round_up(min(row_tile, _round_up(M, 8)), 8)
    while tile_m > 8 and vmem_need(tile_m) > budget:
        tile_m = max(8, _round_up(tile_m // 2, 8))
    # Megacore (v7x): ensure >= 2 grid steps on the parallel row axis.
    if M > 8 and -(-M // tile_m) == 1:
        tile_m = max(8, _round_up(-(-M // 2), 8))

    M_pad = _round_up(M, tile_m)
    if M_pad != M:
        # Zero padding is safe through the highway math; padded rows are sliced off.
        x2 = jnp.pad(x2, ((0, M_pad - M), (0, 0)))
    grid_rows = M_pad // tile_m

    vmem_limit = int(min(max(vmem_need(tile_m) + (4 << 20), 32 << 20), hard_cap))

    cost = pl.CostEstimate(
        flops=int(2 * M_pad * H * (2 * H) * L + 8 * M_pad * H * L),
        transcendentals=int(M_pad * H * L),
        bytes_accessed=int(L * w_layer_bytes + 2 * M_pad * H * x_itemsize),
    )
    out_shape = jax.ShapeDtypeStruct((M_pad, H), x.dtype)

    # TODO(synk): optional EUP-based gate (exp + pl.reciprocal(approx=True)) left
    # out to keep bit-exact sigmoid numerics vs. the PyTorch reference.

    if stream:
        if fused:
            w_specs = [pl.BlockSpec((1, H, 2 * H), lambda i, l: (l, 0, 0)),
                       pl.BlockSpec((1, 1, 2 * H), lambda i, l: (l, 0, 0))]
        else:
            w_specs = [pl.BlockSpec((1, H, H), lambda i, l: (l, 0, 0)),
                       pl.BlockSpec((1, 1, H), lambda i, l: (l, 0, 0)),
                       pl.BlockSpec((1, H, H), lambda i, l: (l, 0, 0)),
                       pl.BlockSpec((1, 1, H), lambda i, l: (l, 0, 0))]
        out = pl.pallas_call(
            functools.partial(_highway_stream_kernel, hidden=H, fused=fused,
                              compute_dtype=compute_dtype),
            out_shape=out_shape,
            grid_spec=pltpu.PrefetchScalarGridSpec(
                num_scalar_prefetch=0,
                grid=(grid_rows, L),
                in_specs=[pl.BlockSpec((tile_m, H), lambda i, l: (i, 0))] + w_specs,
                out_specs=pl.BlockSpec((tile_m, H), lambda i, l: (i, 0)),
                scratch_shapes=[pltpu.VMEM((tile_m, H), jnp.float32)]),
            compiler_params=pltpu.CompilerParams(
                dimension_semantics=("parallel", "arbitrary"),
                vmem_limit_bytes=vmem_limit),
            cost_estimate=cost,
        )(x2, *w_args)
    else:
        full = lambda i: (0, 0, 0)   # constant index map: weights DMA'd once
        if fused:
            w_specs = [pl.BlockSpec((L, H, 2 * H), full),
                       pl.BlockSpec((L, 1, 2 * H), full)]
        else:
            w_specs = [pl.BlockSpec((L, H, H), full),
                       pl.BlockSpec((L, 1, H), full),
                       pl.BlockSpec((L, H, H), full),
                       pl.BlockSpec((L, 1, H), full)]
        out = pl.pallas_call(
            functools.partial(_highway_resident_kernel, num_layers=L, hidden=H,
                              fused=fused, unroll=(L <= 4),
                              compute_dtype=compute_dtype),
            out_shape=out_shape,
            grid_spec=pltpu.PrefetchScalarGridSpec(
                num_scalar_prefetch=0,
                grid=(grid_rows,),
                in_specs=[pl.BlockSpec((tile_m, H), lambda i: (i, 0))] + w_specs,
                out_specs=pl.BlockSpec((tile_m, H), lambda i: (i, 0))),
            compiler_params=pltpu.CompilerParams(
                dimension_semantics=("parallel",),
                vmem_limit_bytes=vmem_limit),
            cost_estimate=cost,
        )(x2, *w_args)

    return out[:M].reshape(orig_shape)


# --------------------------------------------------------------------------
# Params + pure-JAX reference
# --------------------------------------------------------------------------
def init_params(key, num_layers, hidden_size):
    """Deterministic init mimicking nn.Linear default: U(-1/sqrt(H), 1/sqrt(H))."""
    bound = 1.0 / (hidden_size ** 0.5)
    keys = jax.random.split(key, 4)
    # PyTorch Linear weight is (out, in); we store the transposed (in, out) form.
    wt = jax.random.uniform(keys[0], (num_layers, hidden_size, hidden_size),
                            jnp.float32, -bound, bound)
    bt = jax.random.uniform(keys[1], (num_layers, 1, hidden_size),
                            jnp.float32, -bound, bound)
    wg = jax.random.uniform(keys[2], (num_layers, hidden_size, hidden_size),
                            jnp.float32, -bound, bound)
    bg = jax.random.uniform(keys[3], (num_layers, 1, hidden_size),
                            jnp.float32, -bound, bound)
    return wt, bt, wg, bg


def highway_ref(x, wt, bt, wg, bg):
    """Pure-JAX reference matching the PyTorch forward."""
    for l in range(wt.shape[0]):
        g = jax.nn.sigmoid(x @ wg[l] + bg[l])
        t = jnp.maximum(x @ wt[l] + bt[l], 0.0)
        x = g * t + (1.0 - g) * x
    return x


if __name__ == "__main__":
    num_layers = 2
    hidden_size = 32
    batch, seq = 2, 8

    key = jax.random.PRNGKey(0)
    k_x, k_p = jax.random.split(key)
    x = jax.random.normal(k_x, (batch, seq, hidden_size), jnp.float32)
    wt, bt, wg, bg = init_params(k_p, num_layers, hidden_size)

    ref = highway_ref(x.reshape(-1, hidden_size), wt, bt, wg, bg).reshape(x.shape)

    # Default path: resident weights, f32 matmul (H < 128), lane-aligned split.
    out = jax.block_until_ready(highway_encoder(x, wt, bt, wg, bg))
    assert out.shape == x.shape
    assert jnp.allclose(out, ref, atol=1e-5, rtol=1e-5), "mismatch (default path)"

    # Layer-streaming path (auto-selected for large L*H on small-VMEM parts);
    # forced here so it is exercised and checked.
    out_s = jax.block_until_ready(
        highway_encoder(x, wt, bt, wg, bg, force_stream=True))
    assert jnp.allclose(out_s, ref, atol=1e-5, rtol=1e-5), "mismatch (stream path)"

    # bf16-MXU path (auto-selected when H >= 128); forced here, loose tolerance.
    out_bf = jax.block_until_ready(
        highway_encoder(x, wt, bt, wg, bg, matmul_dtype=jnp.bfloat16))
    assert jnp.allclose(out_bf, ref, atol=3e-2, rtol=3e-2), "mismatch (bf16 path)"

    print("KERNEL_OK")
</pallas_src>

<mosaic_0001>
module attributes {stable_mosaic.version = 11 : i64} {
  func.func @_highway_resident_kernel(%arg0: i32, %arg1: memref<8x32xf32, #tpu.memory_space<vmem>>, %arg2: memref<2x32x32xf32, #tpu.memory_space<vmem>>, %arg3: memref<2x1x32xf32, #tpu.memory_space<vmem>>, %arg4: memref<2x32x32xf32, #tpu.memory_space<vmem>>, %arg5: memref<2x1x32xf32, #tpu.memory_space<vmem>>, %arg6: memref<8x32xf32, #tpu.memory_space<vmem>>) attributes {dimension_semantics = [#tpu.dimension_semantics<parallel>], iteration_bounds = array<i64: 2>, scalar_prefetch = 0 : i64, scratch_operands = 0 : i64, tpu.core_type = #tpu.core_type<tc>, window_params = [{transform_indices = @transform_0, window_bounds = array<i64: 8, 32>}, {pipeline_mode = #tpu.pipeline_mode<synchronous>, transform_indices = @transform_1, window_bounds = array<i64: 2, 32, 32>}, {pipeline_mode = #tpu.pipeline_mode<synchronous>, transform_indices = @transform_2, window_bounds = array<i64: 2, 1, 32>}, {pipeline_mode = #tpu.pipeline_mode<synchronous>, transform_indices = @transform_3, window_bounds = array<i64: 2, 32, 32>}, {pipeline_mode = #tpu.pipeline_mode<synchronous>, transform_indices = @transform_4, window_bounds = array<i64: 2, 1, 32>}, {transform_indices = @transform_5, window_bounds = array<i64: 8, 32>}]} {
    %c0 = arith.constant 0 : index
    %c0_0 = arith.constant 0 : index
    %0 = vector.load %arg1[%c0, %c0_0] : memref<8x32xf32, #tpu.memory_space<vmem>>, vector<8x32xf32>
    %c0_i32 = arith.constant 0 : i32
    %1 = arith.index_cast %c0_i32 : i32 to index
    %c0_1 = arith.constant 0 : index
    %c0_2 = arith.constant 0 : index
    %2 = vector.load %arg2[%1, %c0_1, %c0_2] : memref<2x32x32xf32, #tpu.memory_space<vmem>>, vector<1x32x32xf32>
    %3 = vector.shape_cast %2 : vector<1x32x32xf32> to vector<32x32xf32>
    %cst = arith.constant dense<0.000000e+00> : vector<8x32xf32>
    %4 = tpu.matmul %0, %3, %cst {dimension_numbers = #tpu.dot_dimension_numbers<[1], [0], [0], [1], [0, 0, 1, 1], [], []>} : vector<8x32xf32>, vector<32x32xf32>, vector<8x32xf32> -> vector<8x32xf32>
    %5 = arith.index_cast %c0_i32 : i32 to index
    %c0_3 = arith.constant 0 : index
    %c0_4 = arith.constant 0 : index
    %6 = vector.load %arg3[%5, %c0_3, %c0_4] : memref<2x1x32xf32, #tpu.memory_space<vmem>>, vector<1x1x32xf32>
    %7 = vector.shape_cast %6 : vector<1x1x32xf32> to vector<1x32xf32>
    %8 = vector.broadcast %7 : vector<1x32xf32> to vector<8x32xf32>
    %9 = arith.addf %4, %8 : vector<8x32xf32>
    %10 = arith.index_cast %c0_i32 : i32 to index
    %c0_5 = arith.constant 0 : index
    %c0_6 = arith.constant 0 : index
    %11 = vector.load %arg4[%10, %c0_5, %c0_6] : memref<2x32x32xf32, #tpu.memory_space<vmem>>, vector<1x32x32xf32>
    %12 = vector.shape_cast %11 : vector<1x32x32xf32> to vector<32x32xf32>
    %cst_7 = arith.constant dense<0.000000e+00> : vector<8x32xf32>
    %13 = tpu.matmul %0, %12, %cst_7 {dimension_numbers = #tpu.dot_dimension_numbers<[1], [0], [0], [1], [0, 0, 1, 1], [], []>} : vector<8x32xf32>, vector<32x32xf32>, vector<8x32xf32> -> vector<8x32xf32>
    %14 = arith.index_cast %c0_i32 : i32 to index
    %c0_8 = arith.constant 0 : index
    %c0_9 = arith.constant 0 : index
    %15 = vector.load %arg5[%14, %c0_8, %c0_9] : memref<2x1x32xf32, #tpu.memory_space<vmem>>, vector<1x1x32xf32>
    %16 = vector.shape_cast %15 : vector<1x1x32xf32> to vector<1x32xf32>
    %17 = vector.broadcast %16 : vector<1x32xf32> to vector<8x32xf32>
    %18 = arith.addf %13, %17 : vector<8x32xf32>
    %cst_10 = arith.constant 0.000000e+00 : f32
    %19 = vector.broadcast %cst_10 : f32 to vector<8x32xf32>
    %20 = arith.maximumf %9, %19 : vector<8x32xf32>
    %21 = arith.negf %18 : vector<8x32xf32>
    %22 = math.exp %21 : vector<8x32xf32>
    %cst_11 = arith.constant 1.000000e+00 : f32
    %23 = vector.broadcast %cst_11 : f32 to vector<8x32xf32>
    %24 = arith.addf %23, %22 : vector<8x32xf32>
    %25 = arith.divf %23, %24 : vector<8x32xf32>
    %26 = arith.subf %20, %0 : vector<8x32xf32>
    %27 = arith.mulf %25, %26 : vector<8x32xf32>
    %28 = arith.addf %0, %27 : vector<8x32xf32>
    %c1_i32 = arith.constant 1 : i32
    %29 = arith.index_cast %c1_i32 : i32 to index
    %c0_12 = arith.constant 0 : index
    %c0_13 = arith.constant 0 : index
    %30 = vector.load %arg2[%29, %c0_12, %c0_13] : memref<2x32x32xf32, #tpu.memory_space<vmem>>, vector<1x32x32xf32>
    %31 = vector.shape_cast %30 : vector<1x32x32xf32> to vector<32x32xf32>
    %cst_14 = arith.constant dense<0.000000e+00> : vector<8x32xf32>
    %32 = tpu.matmul %28, %31, %cst_14 {dimension_numbers = #tpu.dot_dimension_numbers<[1], [0], [0], [1], [0, 0, 1, 1], [], []>} : vector<8x32xf32>, vector<32x32xf32>, vector<8x32xf32> -> vector<8x32xf32>
    %33 = arith.index_cast %c1_i32 : i32 to index
    %c0_15 = arith.constant 0 : index
    %c0_16 = arith.constant 0 : index
    %34 = vector.load %arg3[%33, %c0_15, %c0_16] : memref<2x1x32xf32, #tpu.memory_space<vmem>>, vector<1x1x32xf32>
    %35 = vector.shape_cast %34 : vector<1x1x32xf32> to vector<1x32xf32>
    %36 = vector.broadcast %35 : vector<1x32xf32> to vector<8x32xf32>
    %37 = arith.addf %32, %36 : vector<8x32xf32>
    %38 = arith.index_cast %c1_i32 : i32 to index
    %c0_17 = arith.constant 0 : index
    %c0_18 = arith.constant 0 : index
    %39 = vector.load %arg4[%38, %c0_17, %c0_18] : memref<2x32x32xf32, #tpu.memory_space<vmem>>, vector<1x32x32xf32>
    %40 = vector.shape_cast %39 : vector<1x32x32xf32> to vector<32x32xf32>
    %cst_19 = arith.constant dense<0.000000e+00> : vector<8x32xf32>
    %41 = tpu.matmul %28, %40, %cst_19 {dimension_numbers = #tpu.dot_dimension_numbers<[1], [0], [0], [1], [0, 0, 1, 1], [], []>} : vector<8x32xf32>, vector<32x32xf32>, vector<8x32xf32> -> vector<8x32xf32>
    %42 = arith.index_cast %c1_i32 : i32 to index
    %c0_20 = arith.constant 0 : index
    %c0_21 = arith.constant 0 : index
    %43 = vector.load %arg5[%42, %c0_20, %c0_21] : memref<2x1x32xf32, #tpu.memory_space<vmem>>, vector<1x1x32xf32>
    %44 = vector.shape_cast %43 : vector<1x1x32xf32> to vector<1x32xf32>
    %45 = vector.broadcast %44 : vector<1x32xf32> to vector<8x32xf32>
    %46 = arith.addf %41, %45 : vector<8x32xf32>
    %cst_22 = arith.constant 0.000000e+00 : f32
    %47 = vector.broadcast %cst_22 : f32 to vector<8x32xf32>
    %48 = arith.maximumf %37, %47 : vector<8x32xf32>
    %49 = arith.negf %46 : vector<8x32xf32>
    %50 = math.exp %49 : vector<8x32xf32>
    %cst_23 = arith.constant 1.000000e+00 : f32
    %51 = vector.broadcast %cst_23 : f32 to vector<8x32xf32>
    %52 = arith.addf %51, %50 : vector<8x32xf32>
    %53 = arith.divf %51, %52 : vector<8x32xf32>
    %54 = arith.subf %48, %28 : vector<8x32xf32>
    %55 = arith.mulf %53, %54 : vector<8x32xf32>
    %56 = arith.addf %28, %55 : vector<8x32xf32>
    %c2_i32 = arith.constant 2 : i32
    %c0_24 = arith.constant 0 : index
    %c0_25 = arith.constant 0 : index
    %57 = vector.load %arg6[%c0_24, %c0_25] : memref<8x32xf32, #tpu.memory_space<vmem>>, vector<8x32xf32>
    tpu.vector_store %arg6[%c0_24, %c0_25], %56 {strides = array<i32>} : memref<8x32xf32, #tpu.memory_space<vmem>>, vector<8x32xf32>,
    return
  }
  func.func @transform_0(%arg0: i32) -> (i32, i32) {
    %c0_i32 = arith.constant 0 : i32
    %c0_i32_0 = arith.constant 0 : i32
    return %arg0, %c0_i32 : i32, i32
  }
  func.func @transform_1(%arg0: i32) -> (i32, i32, i32) {
    %c0_i32 = arith.constant 0 : i32
    %c0_i32_0 = arith.constant 0 : i32
    %c0_i32_1 = arith.constant 0 : i32
    %c0_i32_2 = arith.constant 0 : i32
    return %c0_i32, %c0_i32_0, %c0_i32_1 : i32, i32, i32
  }
  func.func @transform_2(%arg0: i32) -> (i32, i32, i32) {
    %c0_i32 = arith.constant 0 : i32
    %c0_i32_0 = arith.constant 0 : i32
    %c0_i32_1 = arith.constant 0 : i32
    %c0_i32_2 = arith.constant 0 : i32
    return %c0_i32, %c0_i32_0, %c0_i32_1 : i32, i32, i32
  }
  func.func @transform_3(%arg0: i32) -> (i32, i32, i32) {
    %c0_i32 = arith.constant 0 : i32
    %c0_i32_0 = arith.constant 0 : i32
    %c0_i32_1 = arith.constant 0 : i32
    %c0_i32_2 = arith.constant 0 : i32
    return %c0_i32, %c0_i32_0, %c0_i32_1 : i32, i32, i32
  }
  func.func @transform_4(%arg0: i32) -> (i32, i32, i32) {
    %c0_i32 = arith.constant 0 : i32
    %c0_i32_0 = arith.constant 0 : i32
    %c0_i32_1 = arith.constant 0 : i32
    %c0_i32_2 = arith.constant 0 : i32
    return %c0_i32, %c0_i32_0, %c0_i32_1 : i32, i32, i32
  }
  func.func @transform_5(%arg0: i32) -> (i32, i32) {
    %c0_i32 = arith.constant 0 : i32
    %c0_i32_0 = arith.constant 0 : i32
    return %arg0, %c0_i32 : i32, i32
  }
}

</mosaic_0001>

<llo_original>
// kernel: tpu_custom_call.1
$region0: #{tpu_custom_call.1}
  #allocation0 [shape = 'u32[]', space=smem, size = 0x4, offset = 0x4, fixed_abs, tag = 'smem constant byte address 0x4 - core index']
  #allocation1 [shape = 'u32[144,128]{1,0:T(1,128)}', space=vmem, size = 0x12000, scoped, tag = 'internal scratch']
  %s0 = inlined_call_operand.hbm [shape: f32[16,32], index: 0, kind: input, shape index: {}]
  %s1 = inlined_call_operand.hbm [shape: f32[2,32,32], index: 1, kind: input, shape index: {}]
  %s2 = inlined_call_operand.vmem [shape: f32[2,1,32], index: 2, kind: input, shape index: {}]
  %s3 = inlined_call_operand.hbm [shape: f32[2,32,32], index: 3, kind: input, shape index: {}]
  %s4 = inlined_call_operand.vmem [shape: f32[2,1,32], index: 4, kind: input, shape index: {}]
  %s5 = inlined_call_operand.hbm [shape: f32[16,32], index: 5, kind: output, shape index: {}]
  %s6 = sld [smem:[#allocation0]]
  $region65: #{tpu_custom_call.1} parent=0
    _
  %s8 = ssub.s32 1, %s6
  %s9 = scalar_select 0, %s8, %s6
  $region1: #{tpu_custom_call.1} parent=0
    #allocation2 [shape = 'u8[8192]{0}', space=vmem, size = 0x2000, scoped, tag = 'input window, operand 0']
    #allocation3 [shape = 's32[2]{0}', space=sflag, size = 0x8, scoped, tag = 'scoped memory for tpu_custom_call.1']
    #allocation4 [shape = 's32[2]{0}', space=sflag, size = 0x8, scoped, tag = 'scoped memory for tpu_custom_call.1']
    #allocation5 [shape = 'u8[32768]{0}', space=vmem, size = 0x8000, scoped, tag = 'input window, operand 1, single buffered']
    #allocation6 [shape = 's32[1]{0}', space=sflag, size = 0x4, scoped, tag = 'scoped memory for tpu_custom_call.1']
    #allocation7 [shape = 'u8[32768]{0}', space=vmem, size = 0x8000, scoped, tag = 'input window, operand 3, single buffered']
    #allocation8 [shape = 'u8[8192]{0}', space=vmem, size = 0x2000, scoped, tag = 'output window, operand 0']
    %10 = vsyncpa [#allocation3], 0
    %s11 = scalar_lea.sflag [#allocation3], 1
    %12 = vsyncpa %s11, 0
    %13 = vsyncpa [#allocation6], 0
    %14 = vsyncpa [#allocation4], 0
    %s15 = scalar_lea.sflag [#allocation4], 1
    %16 = vsyncpa %s15, 0
    loop: start=0, step=1, limit=4
    $region2: #{tpu_custom_call.1} parent=1 // loop_pre_header
      _
    $region3: #{tpu_custom_call.1} parent=1 // loop_header
      %s18 = sphi 0, %s22
      %p19 = scmp.ge.s32.totalorder %s18, 4
      %s28 = sphi 0, %s30
      %s31 = sphi 0, %s28
      %s32 = sphi 0, %s31
      %s48 = sphi 0, %s32
      %s52 = sphi 0, %s52
      %s54 = sphi 0, %s52
      %s55 = sphi 0, %s54
      %s69 = sphi 0, %s55
      %s73 = sphi 0, %s73
      %s75 = sphi 0, %s73
      %s76 = sphi 0, %s75
      %s90 = sphi 0, %s76
      %s94 = sphi 0, %s94
      %s96 = sphi 0, %s94
      %s97 = sphi 0, %s96
      %s111 = sphi 0, %s97
      %s115 = sphi 0, %s115
      %s117 = sphi 0, %s115
      %s118 = sphi 0, %s117
      %s132 = sphi 0, %s118
      %s138 = sphi 0, %s140
      %s141 = sphi 0, %s138
      %s142 = sphi 0, %s141
      %s158 = sphi 0, %s142
    $region4: #{tpu_custom_call.1} parent=1 // loop_header_branch
      %21 = sbr.rel (%p19) target = $region8
    $region5: #{tpu_custom_call.1} parent=1 // loop_body
      %s23 = ssub.s32 %s18, 1
      %s24 = ssub.s32 %s18, 2
      %s25 = sadd.s32 %s18, 1
      %s26 = ssub.s32 %s18, %s25
      %p27 = scmp.eq.s32.totalorder %s26, 0
      %s29 = sadd.s32 %s28, 1
      %s30 = scalar_select %p27, %s28, %s29
      %p33 = pneg %p27
      %p34 = scmp.eq.s32.totalorder %s18, 1
      %p35 = por %p33, %p34
      %p36 = scmp.ne.s32.totalorder %s28, %s31
      %p37 = scmp.eq.s32.totalorder %s18, 0
      %p38 = por %p36, %p37
      %p39 = scmp.ne.s32.totalorder %s28, %s31
      %p40 = scmp.eq.s32.totalorder %s23, 1
      %p41 = por %p39, %p40
      %p42 = scmp.ne.s32.totalorder %s31, %s32
      %p43 = scmp.eq.s32.totalorder %s23, 0
      %p44 = por %p42, %p43
      %p45 = scmp.ne.s32.totalorder %s31, %s32
      %p46 = scmp.eq.s32.totalorder %s24, 1
      %p47 = por %p45, %p46
      %p49 = scmp.ne.s32.totalorder %s32, %s48
      %p50 = scmp.eq.s32.totalorder %s24, 0
      %p51 = por %p49, %p50
      %s53 = sadd.s32 %s52, 1
      %p56 = scmp.eq.s32.totalorder %s18, 1
      %p57 = scmp.ne.s32.totalorder %s52, %s54
      %p58 = scmp.eq.s32.totalorder %s18, 0
      %p59 = por %p57, %p58
      %p60 = scmp.ne.s32.totalorder %s52, %s54
      %p61 = scmp.eq.s32.totalorder %s23, 1
      %p62 = por %p60, %p61
      %p63 = scmp.ne.s32.totalorder %s54, %s55
      %p64 = scmp.eq.s32.totalorder %s23, 0
      %p65 = por %p63, %p64
      %p66 = scmp.ne.s32.totalorder %s54, %s55
      %p67 = scmp.eq.s32.totalorder %s24, 1
      %p68 = por %p66, %p67
      %p70 = scmp.ne.s32.totalorder %s55, %s69
      %p71 = scmp.eq.s32.totalorder %s24, 0
      %p72 = por %p70, %p71
      %s74 = sadd.s32 %s73, 1
      %p77 = scmp.eq.s32.totalorder %s18, 1
      %p78 = scmp.ne.s32.totalorder %s73, %s75
      %p79 = scmp.eq.s32.totalorder %s18, 0
      %p80 = por %p78, %p79
      %p81 = scmp.ne.s32.totalorder %s73, %s75
      %p82 = scmp.eq.s32.totalorder %s23, 1
      %p83 = por %p81, %p82
      %p84 = scmp.ne.s32.totalorder %s75, %s76
      %p85 = scmp.eq.s32.totalorder %s23, 0
      %p86 = por %p84, %p85
      %p87 = scmp.ne.s32.totalorder %s75, %s76
      %p88 = scmp.eq.s32.totalorder %s24, 1
      %p89 = por %p87, %p88
      %p91 = scmp.ne.s32.totalorder %s76, %s90
      %p92 = scmp.eq.s32.totalorder %s24, 0
      %p93 = por %p91, %p92
      %s95 = sadd.s32 %s94, 1
      %p98 = scmp.eq.s32.totalorder %s18, 1
      %p99 = scmp.ne.s32.totalorder %s94, %s96
      %p100 = scmp.eq.s32.totalorder %s18, 0
      %p101 = por %p99, %p100
      %p102 = scmp.ne.s32.totalorder %s94, %s96
      %p103 = scmp.eq.s32.totalorder %s23, 1
      %p104 = por %p102, %p103
      %p105 = scmp.ne.s32.totalorder %s96, %s97
      %p106 = scmp.eq.s32.totalorder %s23, 0
      %p107 = por %p105, %p106
      %p108 = scmp.ne.s32.totalorder %s96, %s97
      %p109 = scmp.eq.s32.totalorder %s24, 1
      %p110 = por %p108, %p109
      %p112 = scmp.ne.s32.totalorder %s97, %s111
      %p113 = scmp.eq.s32.totalorder %s24, 0
      %p114 = por %p112, %p113
      %s116 = sadd.s32 %s115, 1
      %p119 = scmp.eq.s32.totalorder %s18, 1
      %p120 = scmp.ne.s32.totalorder %s115, %s117
      %p121 = scmp.eq.s32.totalorder %s18, 0
      %p122 = por %p120, %p121
      %p123 = scmp.ne.s32.totalorder %s115, %s117
      %p124 = scmp.eq.s32.totalorder %s23, 1
      %p125 = por %p123, %p124
      %p126 = scmp.ne.s32.totalorder %s117, %s118
      %p127 = scmp.eq.s32.totalorder %s23, 0
      %p128 = por %p126, %p127
      %p129 = scmp.ne.s32.totalorder %s117, %s118
      %p130 = scmp.eq.s32.totalorder %s24, 1
      %p131 = por %p129, %p130
      %p133 = scmp.ne.s32.totalorder %s118, %s132
      %p134 = scmp.eq.s32.totalorder %s24, 0
      %p135 = por %p133, %p134
      %s136 = ssub.s32 %s18, %s25
      %p137 = scmp.eq.s32.totalorder %s136, 0
      %s139 = sadd.s32 %s138, 1
      %s140 = scalar_select %p137, %s138, %s139
      %p143 = pneg %p137
      %p144 = scmp.eq.s32.totalorder %s18, 1
      %p145 = por %p143, %p144
      %p146 = scmp.ne.s32.totalorder %s138, %s141
      %p147 = scmp.eq.s32.totalorder %s18, 0
      %p148 = por %p146, %p147
      %p149 = scmp.ne.s32.totalorder %s138, %s141
      %p150 = scmp.eq.s32.totalorder %s23, 1
      %p151 = por %p149, %p150
      %p152 = scmp.ne.s32.totalorder %s141, %s142
      %p153 = scmp.eq.s32.totalorder %s23, 0
      %p154 = por %p152, %p153
      %p155 = scmp.ne.s32.totalorder %s141, %s142
      %p156 = scmp.eq.s32.totalorder %s24, 1
      %p157 = por %p155, %p156
      %p159 = scmp.ne.s32.totalorder %s142, %s158
      %p160 = scmp.eq.s32.totalorder %s24, 0
      %p161 = por %p159, %p160
      %p162 = scmp.le.s32.totalorder 1, %s18
      %p163 = scmp.lt.s32.totalorder %s18, 3
      %p164 = pnand %p162, %p163
      %p165 = pneg %p164
      // Predicated region
      $region9: #{tpu_custom_call.1} parent=5 // pred_check
        _
      $region10: #{tpu_custom_call.1} parent=5 // pred_check_branch
        %167 = sbr.rel (%p164) target = $region12
      $region11: #{tpu_custom_call.1} parent=5 // pred_region
        %s168 = ssub.s32 %s18, 1
        // Predicated region
        $region13: #{tpu_custom_call.1} parent=11 // pred_check
          %p169 = pneg %p65
        $region14: #{tpu_custom_call.1} parent=11 // pred_check_branch
          %171 = sbr.rel (%p169) target = $region16
        $region15: #{tpu_custom_call.1} parent=11 // pred_region
          %s173 = ssub.s32 1024, 1024
          %174 = vsyncadd [#allocation6], %s173
          %s175 = sshll.u32 [#allocation5], 4
          %s176 = int_to_ptr.vmem [resolvable:$true] %s175
          %181 = dma.hbm_to_vmem [thread:$0]  %s1, 1024, %s176, [#allocation6], 128, 128, 8
        $region16: #{tpu_custom_call.1} parent=11 // pred_fallthru
          _
        // Predicated region
        $region17: #{tpu_custom_call.1} parent=11 // pred_check
          %p182 = pneg %p86
        $region18: #{tpu_custom_call.1} parent=11 // pred_check_branch
          %184 = sbr.rel (%p182) target = $region20
        $region19: #{tpu_custom_call.1} parent=11 // pred_region
          _
        $region20: #{tpu_custom_call.1} parent=11 // pred_fallthru
          _
        // Predicated region
        $region21: #{tpu_custom_call.1} parent=11 // pred_check
          %p185 = pneg %p107
        $region22: #{tpu_custom_call.1} parent=11 // pred_check_branch
          %187 = sbr.rel (%p185) target = $region24
        $region23: #{tpu_custom_call.1} parent=11 // pred_region
          %s189 = ssub.s32 1024, 1024
          %190 = vsyncadd [#allocation6], %s189
          %s191 = sshll.u32 [#allocation7], 4
          %s192 = int_to_ptr.vmem [resolvable:$true] %s191
          %197 = dma.hbm_to_vmem [thread:$0]  %s3, 1024, %s192, [#allocation6], 128, 128, 8
        $region24: #{tpu_custom_call.1} parent=11 // pred_fallthru
          _
        // Predicated region
        $region25: #{tpu_custom_call.1} parent=11 // pred_check
          %p198 = pneg %p128
        $region26: #{tpu_custom_call.1} parent=11 // pred_check_branch
          %200 = sbr.rel (%p198) target = $region28
        $region27: #{tpu_custom_call.1} parent=11 // pred_region
          _
        $region28: #{tpu_custom_call.1} parent=11 // pred_fallthru
          _
      $region12: #{tpu_custom_call.1} parent=5 // pred_fallthru
        _
      %p201 = scmp.lt.s32.totalorder %s18, 2
      // Predicated region
      $region29: #{tpu_custom_call.1} parent=5 // pred_check
        %p202 = pneg %p201
      $region30: #{tpu_custom_call.1} parent=5 // pred_check_branch
        %204 = sbr.rel (%p202) target = $region32
      $region31: #{tpu_custom_call.1} parent=5 // pred_region
        // Predicated region
        $region33: #{tpu_custom_call.1} parent=31 // pred_check
          %p205 = pneg %p38
        $region34: #{tpu_custom_call.1} parent=31 // pred_check_branch
          %207 = sbr.rel (%p205) target = $region36
        $region35: #{tpu_custom_call.1} parent=31 // pred_region
          %s208 = sand.u32 %s28, 1
          %s209 = scalar_lea.sflag [#allocation3], %s208
          %s210 = sand.u32 %s28, 1
          %s211 = smul.addr %s210, 8
          %s212 = scalar_lea.vmem [#allocation2], %s211
          %s214 = ssub.s32 128, 128
          %215 = vsyncadd %s209, %s214
          %s216 = smul.addr %s18, 128
          %s217 = scalar_lea.hbm %s0, %s216
          %s219 = sshll.u32 %s212, 4
          %s220 = int_to_ptr.vmem [resolvable:$true] %s219
          %222 = dma.hbm_to_vmem [thread:$0]  %s217, 128, %s220, %s209
        $region36: #{tpu_custom_call.1} parent=31 // pred_fallthru
          _
      $region32: #{tpu_custom_call.1} parent=5 // pred_fallthru
        _
      %p223 = scmp.le.s32.totalorder 1, %s18
      %p224 = scmp.lt.s32.totalorder %s18, 3
      %p225 = pnand %p223, %p224
      %p226 = pneg %p225
      // Predicated region
      $region37: #{tpu_custom_call.1} parent=5 // pred_check
        _
      $region38: #{tpu_custom_call.1} parent=5 // pred_check_branch
        %228 = sbr.rel (%p225) target = $region40
      $region39: #{tpu_custom_call.1} parent=5 // pred_region
        %s229 = ssub.s32 %s18, 1
        %s230 = sand.u32 %s31, 1
        %s231 = scalar_lea.sflag [#allocation3], %s230
        %s232 = sand.u32 %s31, 1
        %s233 = smul.addr %s232, 8
        %s234 = scalar_lea.vmem [#allocation2], %s233
        // Predicated region
        $region41: #{tpu_custom_call.1} parent=39 // pred_check
          %p235 = pneg %p44
        $region42: #{tpu_custom_call.1} parent=39 // pred_check_branch
          %237 = sbr.rel (%p235) target = $region44
        $region43: #{tpu_custom_call.1} parent=39 // pred_region
          %238 = dma.done %s231, 128
        $region44: #{tpu_custom_call.1} parent=39 // pred_fallthru
          _
        // Predicated region
        $region45: #{tpu_custom_call.1} parent=39 // pred_check
          %p239 = pneg %p65
        $region46: #{tpu_custom_call.1} parent=39 // pred_check_branch
          %241 = sbr.rel (%p239) target = $region48
        $region47: #{tpu_custom_call.1} parent=39 // pred_region
          %242 = dma.done [#allocation6], 1024
        $region48: #{tpu_custom_call.1} parent=39 // pred_fallthru
          _
        // Predicated region
        $region49: #{tpu_custom_call.1} parent=39 // pred_check
          %p243 = pneg %p107
        $region50: #{tpu_custom_call.1} parent=39 // pred_check_branch
          %245 = sbr.rel (%p243) target = $region52
        $region51: #{tpu_custom_call.1} parent=39 // pred_region
          %246 = dma.done [#allocation6], 1024
        $region52: #{tpu_custom_call.1} parent=39 // pred_fallthru
          _
        %s247 = sand.u32 %s31, 1
        %s248 = scalar_lea.sflag [#allocation3], %s247
        %s249 = sand.u32 %s31, 1
        %s250 = smul.addr %s249, 8
        %s251 = scalar_lea.vmem [#allocation2], %s250
        %p252 = pneg %p44
        %p253 = pneg %p41
        %p254 = pneg %p65
        %p255 = pneg %p62
        %p256 = pneg %p86
        %p257 = pneg %p83
        %p258 = pneg %p107
        %p259 = pneg %p104
        %p260 = pneg %p128
        %p261 = pneg %p125
        %p262 = pneg %p154
        %p263 = pneg %p151
        %s264 = sand.u32 %s141, 1
        %s265 = scalar_lea.sflag [#allocation4], %s264
        %s266 = sand.u32 %s141, 1
        %s267 = smul.addr %s266, 8
        %s268 = scalar_lea.vmem [#allocation8], %s267
        %v269 = vld [vmem:[%s234] sm:$0xff]
        %v270 = vld [vmem:[#allocation5] sm:$0xff]
        %v271 = vld [vmem:[#allocation5 + $0x8] sm:$0xff]
        %v272 = vld [vmem:[#allocation5 + $0x10] sm:$0xff]
        %v273 = vld [vmem:[#allocation5 + $0x18] sm:$0xff]
        %v274 = vld [vmem:[%s2] sm:$0x1]
        %v276 = vlaneseq
        %v277 = vshrl.u32 %v276, 7
        %v278 = vsub.s32 0, %v277
        %v279 = vrot.slane %v274, %v278
        %vm281 = vcmask 261120
        %v283 = vsel %vm281, %v269, 0
        %285 = vmatprep.subr.mxu0 0.0
        %286 = vmatpush1.msra.mxu0 %v270
        %287 = vmatprep.subr.mxu0 0.0
        %288 = vmatpush1.msra.mxu0 %v271
        %289 = vmatprep.subr.mxu0 0.0
        %290 = vmatpush1.msra.mxu0 %v272
        %291 = vmatprep.subr.mxu0 0.0
        %292 = vmatpush1.msra.mxu0 %v273
        %293 = vmatprep.subr.mxu0 0.0
        %294 = vmatpush1.msra.mxu0 0.0
        %295 = vmatprep.subr.mxu0 0.0
        %296 = vmatpush1.msra.mxu0 0.0
        %297 = vmatprep.subr.mxu0 0.0
        %298 = vmatpush1.msra.mxu0 0.0
        %299 = vmatprep.subr.mxu0 0.0
        %300 = vmatpush1.msra.mxu0 0.0
        %301 = vmatprep.subr.mxu0 0.0
        %302 = vmatpush1.msra.mxu0 0.0
        %303 = vmatprep.subr.mxu0 0.0
        %304 = vmatpush1.msra.mxu0 0.0
        %305 = vmatprep.subr.mxu0 0.0
        %306 = vmatpush1.msra.mxu0 0.0
        %307 = vmatprep.subr.mxu0 0.0
        %308 = vmatpush1.msra.mxu0 0.0
        %309 = vmatprep.subr.mxu0 0.0
        %310 = vmatpush1.msra.mxu0 0.0
        %311 = vmatprep.subr.mxu0 0.0
        %312 = vmatpush1.msra.mxu0 0.0
        %313 = vmatprep.subr.mxu0 0.0
        %314 = vmatpush1.msra.mxu0 0.0
        %315 = vmatprep.subr.mxu0 0.0
        %316 = vmatpush1.msra.mxu0 0.0
        %317 = vmatprep.subr.mxu0 0.0
        %318 = vmatpush1.msra.mxu0 0.0
        %319 = vmatprep.subr.mxu0 0.0
        %320 = vmatpush1.msra.mxu0 0.0
        %321 = vmatprep.subr.mxu0 0.0
        %322 = vmatpush1.msra.mxu0 0.0
        %323 = vmatprep.subr.mxu0 0.0
        %324 = vmatpush1.msra.mxu0 0.0
        %325 = vmatprep.subr.mxu0 0.0
        %326 = vmatpush1.msra.mxu0 0.0
        %327 = vmatprep.subr.mxu0 0.0
        %328 = vmatpush1.msra.mxu0 0.0
        %329 = vmatprep.subr.mxu0 0.0
        %330 = vmatpush1.msra.mxu0 0.0
        %331 = vmatprep.subr.mxu0 0.0
        %332 = vmatpush1.msra.mxu0 0.0
        %333 = vmatprep.subr.mxu0 0.0
        %334 = vmatpush1.msra.mxu0 0.0
        %335 = vmatprep.subr.mxu0 0.0
        %336 = vmatpush1.msra.mxu0 0.0
        %337 = vmatprep.subr.mxu0 0.0
        %338 = vmatpush1.msra.mxu0 0.0
        %339 = vmatprep.subr.mxu0 0.0
        %340 = vmatpush1.msra.mxu0 0.0
        %341 = vmatprep.subr.mxu0 0.0
        %342 = vmatpush1.msra.mxu0 0.0
        %343 = vmatprep.subr.mxu0 0.0
        %344 = vmatpush1.msra.mxu0 0.0
        %345 = vmatprep.subr.mxu0 0.0
        %346 = vmatpush1.msra.mxu0 0.0
        %347 = vmatprep.subr.mxu0 0.0
        %348 = vmatpush1.msra.mxu0 0.0
        %349 = vmatprep.mubr.f32.mxu0 0.0
        %350 = vmatmul.mubr.f32.gmra.mrb[0].mxu0 %v283
        %v351 = vpop.f32.mrb[0].mxu0
        %v352 = vadd.f32 %v279, %v351
        %v353 = vpop.f32.mrb[0].mxu0
        %354 = vdwg.mxu0
        %v355 = vld [vmem:[#allocation7] sm:$0xff]
        %v356 = vld [vmem:[#allocation7 + $0x8] sm:$0xff]
        %v357 = vld [vmem:[#allocation7 + $0x10] sm:$0xff]
        %v358 = vld [vmem:[#allocation7 + $0x18] sm:$0xff]
        %v359 = vld [vmem:[%s4] sm:$0x1]
        %v361 = vlaneseq
        %v362 = vshrl.u32 %v361, 7
        %v363 = vsub.s32 0, %v362
        %v364 = vrot.slane %v359, %v363
        %366 = vmatprep.subr.mxu0 0.0
        %367 = vmatpush1.msra.mxu0 %v355
        %368 = vmatprep.subr.mxu0 0.0
        %369 = vmatpush1.msra.mxu0 %v356
        %370 = vmatprep.subr.mxu0 0.0
        %371 = vmatpush1.msra.mxu0 %v357
        %372 = vmatprep.subr.mxu0 0.0
        %373 = vmatpush1.msra.mxu0 %v358
        %374 = vmatprep.subr.mxu0 0.0
        %375 = vmatpush1.msra.mxu0 0.0
        %376 = vmatprep.subr.mxu0 0.0
        %377 = vmatpush1.msra.mxu0 0.0
        %378 = vmatprep.subr.mxu0 0.0
        %379 = vmatpush1.msra.mxu0 0.0
        %380 = vmatprep.subr.mxu0 0.0
        %381 = vmatpush1.msra.mxu0 0.0
        %382 = vmatprep.subr.mxu0 0.0
        %383 = vmatpush1.msra.mxu0 0.0
        %384 = vmatprep.subr.mxu0 0.0
        %385 = vmatpush1.msra.mxu0 0.0
        %386 = vmatprep.subr.mxu0 0.0
        %387 = vmatpush1.msra.mxu0 0.0
        %388 = vmatprep.subr.mxu0 0.0
        %389 = vmatpush1.msra.mxu0 0.0
        %390 = vmatprep.subr.mxu0 0.0
        %391 = vmatpush1.msra.mxu0 0.0
        %392 = vmatprep.subr.mxu0 0.0
        %393 = vmatpush1.msra.mxu0 0.0
        %394 = vmatprep.subr.mxu0 0.0
        %395 = vmatpush1.msra.mxu0 0.0
        %396 = vmatprep.subr.mxu0 0.0
        %397 = vmatpush1.msra.mxu0 0.0
        %398 = vmatprep.subr.mxu0 0.0
        %399 = vmatpush1.msra.mxu0 0.0
        %400 = vmatprep.subr.mxu0 0.0
        %401 = vmatpush1.msra.mxu0 0.0
        %402 = vmatprep.subr.mxu0 0.0
        %403 = vmatpush1.msra.mxu0 0.0
        %404 = vmatprep.subr.mxu0 0.0
        %405 = vmatpush1.msra.mxu0 0.0
        %406 = vmatprep.subr.mxu0 0.0
        %407 = vmatpush1.msra.mxu0 0.0
        %408 = vmatprep.subr.mxu0 0.0
        %409 = vmatpush1.msra.mxu0 0.0
        %410 = vmatprep.subr.mxu0 0.0
        %411 = vmatpush1.msra.mxu0 0.0
        %412 = vmatprep.subr.mxu0 0.0
        %413 = vmatpush1.msra.mxu0 0.0
        %414 = vmatprep.subr.mxu0 0.0
        %415 = vmatpush1.msra.mxu0 0.0
        %416 = vmatprep.subr.mxu0 0.0
        %417 = vmatpush1.msra.mxu0 0.0
        %418 = vmatprep.subr.mxu0 0.0
        %419 = vmatpush1.msra.mxu0 0.0
        %420 = vmatprep.subr.mxu0 0.0
        %421 = vmatpush1.msra.mxu0 0.0
        %422 = vmatprep.subr.mxu0 0.0
        %423 = vmatpush1.msra.mxu0 0.0
        %424 = vmatprep.subr.mxu0 0.0
        %425 = vmatpush1.msra.mxu0 0.0
        %426 = vmatprep.subr.mxu0 0.0
        %427 = vmatpush1.msra.mxu0 0.0
        %428 = vmatprep.subr.mxu0 0.0
        %429 = vmatpush1.msra.mxu0 0.0
        %430 = vmatprep.mubr.f32.mxu0 0.0
        %431 = vmatmul.mubr.f32.gmra.mrb[0].mxu0 %v283
        %v432 = vpop.f32.mrb[0].mxu0
        %v433 = vadd.f32 %v364, %v432
        %v434 = vpop.f32.mrb[0].mxu0
        %435 = vdwg.mxu0
        %v436 = vmax.f32 %v352, 0.0
        %v437 = vxor.u32 %v433, 2147483648
        %v438 = vmul.f32 %v437, 1.442695
        %v439 = vpow.pop %v438
        %v440 = vadd.f32 %v439, 1.0
        %v441 = vrcp.pop %v440
        %v442 = vmul.f32 1.0, %v441
        %v443 = vsub.f32 %v436, %v269
        %v444 = vmul.f32 %v442, %v443
        %v445 = vadd.f32 %v269, %v444
        %s446 = scalar_lea.vmem [#allocation5], 32
        %v447 = vld [vmem:[%s446] sm:$0xff]
        %v448 = vld [vmem:[%s446 + $0x8] sm:$0xff]
        %v449 = vld [vmem:[%s446 + $0x10] sm:$0xff]
        %v450 = vld [vmem:[%s446 + $0x18] sm:$0xff]
        %s451 = scalar_lea.vmem %s2, 1
        %v452 = vld [vmem:[%s451] sm:$0x1]
        %v454 = vlaneseq
        %v455 = vshrl.u32 %v454, 7
        %v456 = vsub.s32 0, %v455
        %v457 = vrot.slane %v452, %v456
        %v460 = vsel %vm281, %v445, 0
        %462 = vmatprep.subr.mxu0 0.0
        %463 = vmatpush1.msra.mxu0 %v447
        %464 = vmatprep.subr.mxu0 0.0
        %465 = vmatpush1.msra.mxu0 %v448
        %466 = vmatprep.subr.mxu0 0.0
        %467 = vmatpush1.msra.mxu0 %v449
        %468 = vmatprep.subr.mxu0 0.0
        %469 = vmatpush1.msra.mxu0 %v450
        %470 = vmatprep.subr.mxu0 0.0
        %471 = vmatpush1.msra.mxu0 0.0
        %472 = vmatprep.subr.mxu0 0.0
        %473 = vmatpush1.msra.mxu0 0.0
        %474 = vmatprep.subr.mxu0 0.0
        %475 = vmatpush1.msra.mxu0 0.0
        %476 = vmatprep.subr.mxu0 0.0
        %477 = vmatpush1.msra.mxu0 0.0
        %478 = vmatprep.subr.mxu0 0.0
        %479 = vmatpush1.msra.mxu0 0.0
        %480 = vmatprep.subr.mxu0 0.0
        %481 = vmatpush1.msra.mxu0 0.0
        %482 = vmatprep.subr.mxu0 0.0
        %483 = vmatpush1.msra.mxu0 0.0
        %484 = vmatprep.subr.mxu0 0.0
        %485 = vmatpush1.msra.mxu0 0.0
        %486 = vmatprep.subr.mxu0 0.0
        %487 = vmatpush1.msra.mxu0 0.0
        %488 = vmatprep.subr.mxu0 0.0
        %489 = vmatpush1.msra.mxu0 0.0
        %490 = vmatprep.subr.mxu0 0.0
        %491 = vmatpush1.msra.mxu0 0.0
        %492 = vmatprep.subr.mxu0 0.0
        %493 = vmatpush1.msra.mxu0 0.0
        %494 = vmatprep.subr.mxu0 0.0
        %495 = vmatpush1.msra.mxu0 0.0
        %496 = vmatprep.subr.mxu0 0.0
        %497 = vmatpush1.msra.mxu0 0.0
        %498 = vmatprep.subr.mxu0 0.0
        %499 = vmatpush1.msra.mxu0 0.0
        %500 = vmatprep.subr.mxu0 0.0
        %501 = vmatpush1.msra.mxu0 0.0
        %502 = vmatprep.subr.mxu0 0.0
        %503 = vmatpush1.msra.mxu0 0.0
        %504 = vmatprep.subr.mxu0 0.0
        %505 = vmatpush1.msra.mxu0 0.0
        %506 = vmatprep.subr.mxu0 0.0
        %507 = vmatpush1.msra.mxu0 0.0
        %508 = vmatprep.subr.mxu0 0.0
        %509 = vmatpush1.msra.mxu0 0.0
        %510 = vmatprep.subr.mxu0 0.0
        %511 = vmatpush1.msra.mxu0 0.0
        %512 = vmatprep.subr.mxu0 0.0
        %513 = vmatpush1.msra.mxu0 0.0
        %514 = vmatprep.subr.mxu0 0.0
        %515 = vmatpush1.msra.mxu0 0.0
        %516 = vmatprep.subr.mxu0 0.0
        %517 = vmatpush1.msra.mxu0 0.0
        %518 = vmatprep.subr.mxu0 0.0
        %519 = vmatpush1.msra.mxu0 0.0
        %520 = vmatprep.subr.mxu0 0.0
        %521 = vmatpush1.msra.mxu0 0.0
        %522 = vmatprep.subr.mxu0 0.0
        %523 = vmatpush1.msra.mxu0 0.0
        %524 = vmatprep.subr.mxu0 0.0
        %525 = vmatpush1.msra.mxu0 0.0
        %526 = vmatprep.mubr.f32.mxu0 0.0
        %527 = vmatmul.mubr.f32.gmra.mrb[0].mxu0 %v460
        %v528 = vpop.f32.mrb[0].mxu0
        %v529 = vadd.f32 %v457, %v528
        %v530 = vpop.f32.mrb[0].mxu0
        %531 = vdwg.mxu0
        %s532 = scalar_lea.vmem [#allocation7], 32
        %v533 = vld [vmem:[%s532] sm:$0xff]
        %v534 = vld [vmem:[%s532 + $0x8] sm:$0xff]
        %v535 = vld [vmem:[%s532 + $0x10] sm:$0xff]
        %v536 = vld [vmem:[%s532 + $0x18] sm:$0xff]
        %s537 = scalar_lea.vmem %s4, 1
        %v538 = vld [vmem:[%s537] sm:$0x1]
        %v540 = vlaneseq
        %v541 = vshrl.u32 %v540, 7
        %v542 = vsub.s32 0, %v541
        %v543 = vrot.slane %v538, %v542
        %545 = vmatprep.subr.mxu0 0.0
        %546 = vmatpush1.msra.mxu0 %v533
        %547 = vmatprep.subr.mxu0 0.0
        %548 = vmatpush1.msra.mxu0 %v534
        %549 = vmatprep.subr.mxu0 0.0
        %550 = vmatpush1.msra.mxu0 %v535
        %551 = vmatprep.subr.mxu0 0.0
        %552 = vmatpush1.msra.mxu0 %v536
        %553 = vmatprep.subr.mxu0 0.0
        %554 = vmatpush1.msra.mxu0 0.0
        %555 = vmatprep.subr.mxu0 0.0
        %556 = vmatpush1.msra.mxu0 0.0
        %557 = vmatprep.subr.mxu0 0.0
        %558 = vmatpush1.msra.mxu0 0.0
        %559 = vmatprep.subr.mxu0 0.0
        %560 = vmatpush1.msra.mxu0 0.0
        %561 = vmatprep.subr.mxu0 0.0
        %562 = vmatpush1.msra.mxu0 0.0
        %563 = vmatprep.subr.mxu0 0.0
        %564 = vmatpush1.msra.mxu0 0.0
        %565 = vmatprep.subr.mxu0 0.0
        %566 = vmatpush1.msra.mxu0 0.0
        %567 = vmatprep.subr.mxu0 0.0
        %568 = vmatpush1.msra.mxu0 0.0
        %569 = vmatprep.subr.mxu0 0.0
        %570 = vmatpush1.msra.mxu0 0.0
        %571 = vmatprep.subr.mxu0 0.0
        %572 = vmatpush1.msra.mxu0 0.0
        %573 = vmatprep.subr.mxu0 0.0
        %574 = vmatpush1.msra.mxu0 0.0
        %575 = vmatprep.subr.mxu0 0.0
        %576 = vmatpush1.msra.mxu0 0.0
        %577 = vmatprep.subr.mxu0 0.0
        %578 = vmatpush1.msra.mxu0 0.0
        %579 = vmatprep.subr.mxu0 0.0
        %580 = vmatpush1.msra.mxu0 0.0
        %581 = vmatprep.subr.mxu0 0.0
        %582 = vmatpush1.msra.mxu0 0.0
        %583 = vmatprep.subr.mxu0 0.0
        %584 = vmatpush1.msra.mxu0 0.0
        %585 = vmatprep.subr.mxu0 0.0
        %586 = vmatpush1.msra.mxu0 0.0
        %587 = vmatprep.subr.mxu0 0.0
        %588 = vmatpush1.msra.mxu0 0.0
        %589 = vmatprep.subr.mxu0 0.0
        %590 = vmatpush1.msra.mxu0 0.0
        %591 = vmatprep.subr.mxu0 0.0
        %592 = vmatpush1.msra.mxu0 0.0
        %593 = vmatprep.subr.mxu0 0.0
        %594 = vmatpush1.msra.mxu0 0.0
        %595 = vmatprep.subr.mxu0 0.0
        %596 = vmatpush1.msra.mxu0 0.0
        %597 = vmatprep.subr.mxu0 0.0
        %598 = vmatpush1.msra.mxu0 0.0
        %599 = vmatprep.subr.mxu0 0.0
        %600 = vmatpush1.msra.mxu0 0.0
        %601 = vmatprep.subr.mxu0 0.0
        %602 = vmatpush1.msra.mxu0 0.0
        %603 = vmatprep.subr.mxu0 0.0
        %604 = vmatpush1.msra.mxu0 0.0
        %605 = vmatprep.subr.mxu0 0.0
        %606 = vmatpush1.msra.mxu0 0.0
        %607 = vmatprep.subr.mxu0 0.0
        %608 = vmatpush1.msra.mxu0 0.0
        %609 = vmatprep.mubr.f32.mxu0 0.0
        %610 = vmatmul.mubr.f32.gmra.mrb[0].mxu0 %v460
        %v611 = vpop.f32.mrb[0].mxu0
        %v612 = vadd.f32 %v543, %v611
        %v613 = vpop.f32.mrb[0].mxu0
        %614 = vdwg.mxu0
        %v615 = vmax.f32 %v529, 0.0
        %v616 = vxor.u32 %v612, 2147483648
        %v617 = vmul.f32 %v616, 1.442695
        %v618 = vpow.pop %v617
        %v619 = vadd.f32 %v618, 1.0
        %v620 = vrcp.pop %v619
        %v621 = vmul.f32 1.0, %v620
        %v622 = vsub.f32 %v615, %v445
        %v623 = vmul.f32 %v621, %v622
        %v624 = vadd.f32 %v445, %v623
        %625 = vst.msk [vmem:[%s268] sm:$0xff] %vm281, %v624
        %s626 = sand.u32 %s141, 1
        %s627 = scalar_lea.sflag [#allocation4], %s626
        %s628 = sand.u32 %s141, 1
        %s629 = smul.addr %s628, 8
        %s630 = scalar_lea.vmem [#allocation8], %s629
        // Predicated region
        $region53: #{tpu_custom_call.1} parent=39 // pred_check
          %p631 = pneg %p151
        $region54: #{tpu_custom_call.1} parent=39 // pred_check_branch
          %633 = sbr.rel (%p631) target = $region56
        $region55: #{tpu_custom_call.1} parent=39 // pred_region
          %s635 = ssub.s32 128, 128
          %636 = vsyncadd %s627, %s635
          %s637 = smul.addr %s23, 128
          %s638 = scalar_lea.hbm %s5, %s637
          %s640 = sshll.u32 %s630, 4
          %s641 = int_to_ptr.vmem [resolvable:$true] %s640
          %643 = dma.vmem_to_hbm [thread:$0]  %s641, 128, %s638, %s627
        $region56: #{tpu_custom_call.1} parent=39 // pred_fallthru
          _
      $region40: #{tpu_custom_call.1} parent=5 // pred_fallthru
        _
      %p644 = scmp.le.s32.totalorder 2, %s18
      // Predicated region
      $region57: #{tpu_custom_call.1} parent=5 // pred_check
        %p645 = pneg %p644
      $region58: #{tpu_custom_call.1} parent=5 // pred_check_branch
        %647 = sbr.rel (%p645) target = $region60
      $region59: #{tpu_custom_call.1} parent=5 // pred_region
        %s648 = ssub.s32 %s18, 2
        // Predicated region
        $region61: #{tpu_custom_call.1} parent=59 // pred_check
          %p649 = pneg %p157
        $region62: #{tpu_custom_call.1} parent=59 // pred_check_branch
          %651 = sbr.rel (%p649) target = $region64
        $region63: #{tpu_custom_call.1} parent=59 // pred_region
          %s652 = sand.u32 %s142, 1
          %s653 = scalar_lea.sflag [#allocation4], %s652
          %s654 = sand.u32 %s142, 1
          %s655 = smul.addr %s654, 8
          %s656 = scalar_lea.vmem [#allocation8], %s655
          %657 = dma.done %s653, 128
        $region64: #{tpu_custom_call.1} parent=59 // pred_fallthru
          _
      $region60: #{tpu_custom_call.1} parent=5 // pred_fallthru
        _
    $region6: #{tpu_custom_call.1} parent=1 // loop_footer
      %s22 = sadd.s32 1, %s18
    $region7: #{tpu_custom_call.1} parent=1 // loop_footer_branch
      %17 = sbr.rel target = $region3
    $region8: #{tpu_custom_call.1} parent=1 // loop_exit
      _
    %658 = vsyncpa [#allocation3], 1
    %s659 = scalar_lea.sflag [#allocation3], 1
    %660 = vsyncpa %s659, 1
    %661 = vsyncpa [#allocation6], 1
    %662 = vsyncpa [#allocation4], 1
    %s663 = scalar_lea.sflag [#allocation4], 1
    %664 = vsyncpa %s663, 1

</llo_original>
